<compile_context>
chip_gen: v5e
topology: v5e:2x2
jax: 0.10.0
libtpu: 0.0.40
codegen_flags: <defaults>
</compile_context>

<pallas_src>
import jax
import jax.numpy as jnp
from jax.experimental import pallas as pl
from jax.experimental.pallas import tpu as pltpu

SELU_ALPHA = 1.6732632423543772
SELU_SCALE = 1.0507009873554805
BN_EPS = 1e-5


def _round_up(x, m):
    return ((x + m - 1) // m) * m


def fc_kernel(x_ref, w_ref, b_ref, o_ref, acc_ref):
    """Computes one (TN, TD) output tile; K is streamed over the last grid axis."""
    k = pl.program_id(2)

    @pl.when(k == 0)
    def _init():
        acc_ref[...] = jnp.zeros_like(acc_ref)

    # bf16 x bf16 -> f32 accumulation on the MXU.
    acc_ref[...] += jnp.dot(x_ref[...], w_ref[...],
                            preferred_element_type=jnp.float32)

    @pl.when(k == pl.num_programs(2) - 1)
    def _finalize():
        y = acc_ref[...] + b_ref[...]                          # (TN, TD) f32
        # SELU; clamp the exp argument so discarded lanes never produce inf.
        neg = SELU_ALPHA * (jnp.exp(jnp.minimum(y, 0.0)) - 1.0)
        o_ref[...] = (SELU_SCALE * jnp.where(y > 0.0, y, neg)).astype(o_ref.dtype)


def fc_forward(x, gamma, beta, w, b, *, eps=BN_EPS, tn=256, td=256, tk=512):
    """Forward of FC: AlphaDropout(SELU(Linear(BatchNorm1d(x)))), dropout p = 0."""
    N, Din = x.shape
    Dout = w.shape[1]

    x32 = x.astype(jnp.float32)

    # ---- BatchNorm1d (training mode: biased batch stats), folded into the Linear.
    mean = jnp.mean(x32, axis=0, keepdims=True)                    # (1, Din)
    var = jnp.mean(jnp.square(x32 - mean), axis=0, keepdims=True)  # (1, Din)
    s = gamma * jax.lax.rsqrt(var + eps)                           # (1, Din)
    t = beta - mean * s                                            # (1, Din)
    w_folded = s.reshape(Din, 1) * w                               # (Din, Dout)
    b_folded = t @ w + b                                           # (1, Dout)

    # ---- Tile sizes / padding (lane-dense output, MXU-friendly operands).
    TN = min(tn, _round_up(N, 16))
    TD = min(td, _round_up(Dout, 128))
    TK = min(tk, _round_up(Din, 128))
    Np = _round_up(N, TN)
    Dp = _round_up(Dout, TD)
    Kp = _round_up(Din, TK)

    x_p = jnp.pad(x32, ((0, Np - N), (0, Kp - Din))).astype(jnp.bfloat16)
    w_p = jnp.pad(w_folded, ((0, Kp - Din), (0, Dp - Dout))).astype(jnp.bfloat16)
    b_p = jnp.pad(b_folded.astype(jnp.float32), ((0, 0), (0, Dp - Dout)))

    grid = (Np // TN, Dp // TD, Kp // TK)

    out = pl.pallas_call(
        fc_kernel,
        out_shape=jax.ShapeDtypeStruct((Np, Dp), jnp.float32),
        grid_spec=pltpu.PrefetchScalarGridSpec(
            num_scalar_prefetch=0,
            grid=grid,
            in_specs=[
                pl.BlockSpec((TN, TK), lambda i, j, k: (i, k)),   # x tile (bf16)
                pl.BlockSpec((TK, TD), lambda i, j, k: (k, j)),   # W tile (bf16)
                pl.BlockSpec((1, TD), lambda i, j, k: (0, j)),    # bias row (f32)
            ],
            out_specs=pl.BlockSpec((TN, TD), lambda i, j, k: (i, j)),
            scratch_shapes=[pltpu.VMEM((TN, TD), jnp.float32)],   # f32 accumulator
        ),
        compiler_params=pltpu.CompilerParams(
            dimension_semantics=("parallel", "parallel", "arbitrary"),
            vmem_limit_bytes=32 * 1024 * 1024,
        ),
    )(x_p, w_p, b_p)

    return out[:N, :Dout]


def reference_forward(x, gamma, beta, w, b, eps=BN_EPS):
    mean = jnp.mean(x, axis=0, keepdims=True)
    var = jnp.mean((x - mean) ** 2, axis=0, keepdims=True)
    xn = (x - mean) * jax.lax.rsqrt(var + eps) * gamma + beta
    y = xn @ w + b
    return SELU_SCALE * jnp.where(y > 0, y, SELU_ALPHA * (jnp.exp(y) - 1.0))


if __name__ == "__main__":
    # Small, deliberately non-aligned shapes (exercise the padding paths).
    N, dim_in, dim_out = 64, 48, 80

    key = jax.random.PRNGKey(0)
    kx, kw, kb, kg, kbe = jax.random.split(key, 5)

    x = jax.random.normal(kx, (N, dim_in), dtype=jnp.float32)

    bound = 1.0 / (dim_in ** 0.5)
    w = jax.random.uniform(kw, (dim_in, dim_out), jnp.float32, -bound, bound)
    b = jax.random.uniform(kb, (1, dim_out), jnp.float32, -bound, bound)
    # BatchNorm affine parameters (default init is gamma=1, beta=0; perturb to
    # actually exercise the BN fold).
    gamma = 1.0 + 0.1 * jax.random.normal(kg, (1, dim_in), dtype=jnp.float32)
    beta = 0.1 * jax.random.normal(kbe, (1, dim_in), dtype=jnp.float32)

    out = jax.block_until_ready(fc_forward(x, gamma, beta, w, b))
    ref = reference_forward(x, gamma, beta, w, b)

    assert out.shape == (N, dim_out)
    # bf16 matmul with f32 accumulation vs f32 reference -> loosened tolerance.
    max_diff = float(jnp.max(jnp.abs(out - ref)))
    assert jnp.allclose(out, ref, atol=3e-2, rtol=3e-2), (
        f"mismatch vs reference: max abs diff = {max_diff}")

    print("KERNEL_OK")
</pallas_src>

<mosaic_0001>
module attributes {stable_mosaic.version = 11 : i64} {
  func.func @fc_kernel(%arg0: i32, %arg1: i32, %arg2: i32, %arg3: memref<64x128xbf16, #tpu.memory_space<vmem>>, %arg4: memref<128x128xbf16, #tpu.memory_space<vmem>>, %arg5: memref<1x128xf32, #tpu.memory_space<vmem>>, %arg6: memref<64x128xf32, #tpu.memory_space<vmem>>, %arg7: memref<64x128xf32, #tpu.memory_space<vmem>>) attributes {dimension_semantics = [#tpu.dimension_semantics<parallel>, #tpu.dimension_semantics<parallel>, #tpu.dimension_semantics<arbitrary>], iteration_bounds = array<i64: 1, 1, 1>, scalar_prefetch = 0 : i64, scratch_operands = 1 : i64, tpu.core_type = #tpu.core_type<tc>, window_params = [{transform_indices = @transform_0, window_bounds = array<i64: 64, 128>}, {transform_indices = @transform_1, window_bounds = array<i64: 128, 128>}, {transform_indices = @transform_2, window_bounds = array<i64: 1, 128>}, {transform_indices = @transform_3, window_bounds = array<i64: 64, 128>}]} {
    %c0_i32 = arith.constant 0 : i32
    %0 = arith.cmpi eq, %arg2, %c0_i32 : i32
    %1 = arith.extui %0 : i1 to i32
    %c0_i32_0 = arith.constant 0 : i32
    %2 = arith.cmpi ne, %1, %c0_i32_0 : i32
    scf.if %2 {
      %cst_10 = arith.constant 0.000000e+00 : f32
      %12 = vector.broadcast %cst_10 : f32 to vector<64x128xf32>
      %c0_11 = arith.constant 0 : index
      %c0_12 = arith.constant 0 : index
      %13 = vector.load %arg7[%c0_11, %c0_12] : memref<64x128xf32, #tpu.memory_space<vmem>>, vector<64x128xf32>
      tpu.vector_store %arg7[%c0_11, %c0_12], %12 {strides = array<i32>} : memref<64x128xf32, #tpu.memory_space<vmem>>, vector<64x128xf32>,
    } else {
    }
    %c0 = arith.constant 0 : index
    %c0_1 = arith.constant 0 : index
    %3 = vector.load %arg7[%c0, %c0_1] : memref<64x128xf32, #tpu.memory_space<vmem>>, vector<64x128xf32>
    %c0_2 = arith.constant 0 : index
    %c0_3 = arith.constant 0 : index
    %4 = vector.load %arg3[%c0_2, %c0_3] : memref<64x128xbf16, #tpu.memory_space<vmem>>, vector<64x128xbf16>
    %c0_4 = arith.constant 0 : index
    %c0_5 = arith.constant 0 : index
    %5 = vector.load %arg4[%c0_4, %c0_5] : memref<128x128xbf16, #tpu.memory_space<vmem>>, vector<128x128xbf16>
    %cst = arith.constant dense<0.000000e+00> : vector<64x128xf32>
    %6 = tpu.matmul %4, %5, %cst {dimension_numbers = #tpu.dot_dimension_numbers<[1], [0], [0], [1], [0, 0, 1, 1], [], []>} : vector<64x128xbf16>, vector<128x128xbf16>, vector<64x128xf32> -> vector<64x128xf32>
    %7 = arith.addf %3, %6 : vector<64x128xf32>
    %c0_6 = arith.constant 0 : index
    %c0_7 = arith.constant 0 : index
    %8 = vector.load %arg7[%c0_6, %c0_7] : memref<64x128xf32, #tpu.memory_space<vmem>>, vector<64x128xf32>
    tpu.vector_store %arg7[%c0_6, %c0_7], %7 {strides = array<i32>} : memref<64x128xf32, #tpu.memory_space<vmem>>, vector<64x128xf32>,
    %c0_i32_8 = arith.constant 0 : i32
    %9 = arith.cmpi eq, %arg2, %c0_i32_8 : i32
    %10 = arith.extui %9 : i1 to i32
    %c0_i32_9 = arith.constant 0 : i32
    %11 = arith.cmpi ne, %10, %c0_i32_9 : i32
    scf.if %11 {
      %c0_10 = arith.constant 0 : index
      %c0_11 = arith.constant 0 : index
      %12 = vector.load %arg7[%c0_10, %c0_11] : memref<64x128xf32, #tpu.memory_space<vmem>>, vector<64x128xf32>
      %c0_12 = arith.constant 0 : index
      %c0_13 = arith.constant 0 : index
      %13 = vector.load %arg5[%c0_12, %c0_13] : memref<1x128xf32, #tpu.memory_space<vmem>>, vector<1x128xf32>
      %14 = vector.broadcast %13 : vector<1x128xf32> to vector<64x128xf32>
      %15 = arith.addf %12, %14 : vector<64x128xf32>
      %cst_14 = arith.constant 0.000000e+00 : f32
      %16 = vector.broadcast %cst_14 : f32 to vector<64x128xf32>
      %17 = arith.minimumf %15, %16 : vector<64x128xf32>
      %18 = math.exp %17 : vector<64x128xf32>
      %cst_15 = arith.constant 1.000000e+00 : f32
      %19 = vector.broadcast %cst_15 : f32 to vector<64x128xf32>
      %20 = arith.subf %18, %19 : vector<64x128xf32>
      %cst_16 = arith.constant 1.67326319 : f32
      %21 = vector.broadcast %cst_16 : f32 to vector<64x128xf32>
      %22 = arith.mulf %21, %20 : vector<64x128xf32>
      %cst_17 = arith.constant 0.000000e+00 : f32
      %23 = vector.broadcast %cst_17 : f32 to vector<64x128xf32>
      %24 = arith.cmpf ogt, %15, %23 : vector<64x128xf32>
      %25 = arith.select %24, %15, %22 : vector<64x128xi1>, vector<64x128xf32>
      %cst_18 = arith.constant 1.05070102 : f32
      %26 = vector.broadcast %cst_18 : f32 to vector<64x128xf32>
      %27 = arith.mulf %26, %25 : vector<64x128xf32>
      %c0_19 = arith.constant 0 : index
      %c0_20 = arith.constant 0 : index
      %28 = vector.load %arg6[%c0_19, %c0_20] : memref<64x128xf32, #tpu.memory_space<vmem>>, vector<64x128xf32>
      tpu.vector_store %arg6[%c0_19, %c0_20], %27 {strides = array<i32>} : memref<64x128xf32, #tpu.memory_space<vmem>>, vector<64x128xf32>,
    } else {
    }
    return
  }
  func.func @transform_0(%arg0: i32, %arg1: i32, %arg2: i32) -> (i32, i32) {
    %c0_i32 = arith.constant 0 : i32
    return %arg0, %arg2 : i32, i32
  }
  func.func @transform_1(%arg0: i32, %arg1: i32, %arg2: i32) -> (i32, i32) {
    %c0_i32 = arith.constant 0 : i32
    return %arg2, %arg1 : i32, i32
  }
  func.func @transform_2(%arg0: i32, %arg1: i32, %arg2: i32) -> (i32, i32) {
    %c0_i32 = arith.constant 0 : i32
    %c0_i32_0 = arith.constant 0 : i32
    return %c0_i32, %arg1 : i32, i32
  }
  func.func @transform_3(%arg0: i32, %arg1: i32, %arg2: i32) -> (i32, i32) {
    %c0_i32 = arith.constant 0 : i32
    return %arg0, %arg1 : i32, i32
  }
}

</mosaic_0001>

<llo_original>
// kernel: tpu_custom_call.1
$region0: #{tpu_custom_call.1}
  #allocation0 [shape = 'u32[]', space=smem, size = 0x4, offset = 0x4, fixed_abs, tag = 'smem constant byte address 0x4 - core index']
  #allocation1 [shape = 'u32[72,128]{1,0:T(1,128)}', space=vmem, size = 0x9000, scoped, tag = 'internal scratch']
  #allocation2 [shape = 'f32[64,128]{1,0:T(8,128)}', space=vmem, size = 0x8000, scoped, tag = 'scratch operand']
  %s0 = inlined_call_operand.hbm [shape: bf16[64,128], index: 0, kind: input, shape index: {}]
  %s1 = inlined_call_operand.hbm [shape: bf16[128,128], index: 1, kind: input, shape index: {}]
  %s2 = inlined_call_operand.vmem [shape: f32[1,128], index: 2, kind: input, shape index: {}]
  %s3 = inlined_call_operand.hbm [shape: f32[64,128], index: 3, kind: output, shape index: {}]
  %s4 = sld [smem:[#allocation0]]
  $region38: #{tpu_custom_call.1} parent=0
    _
  %s6 = ssub.s32 1, %s4
  %s7 = scalar_select 0, %s6, %s4
  $region1: #{tpu_custom_call.1} parent=0
    #allocation3 [shape = 'u8[16384]{0}', space=vmem, size = 0x4000, scoped, tag = 'input window, operand 0, single buffered']
    #allocation4 [shape = 's32[1]{0}', space=sflag, size = 0x4, scoped, tag = 'scoped memory for tpu_custom_call.1']
    #allocation5 [shape = 's32[1]{0}', space=sflag, size = 0x4, scoped, tag = 'scoped memory for tpu_custom_call.1']
    #allocation6 [shape = 'u8[32768]{0}', space=vmem, size = 0x8000, scoped, tag = 'input window, operand 1, single buffered']
    #allocation7 [shape = 's32[1]{0}', space=sflag, size = 0x4, scoped, tag = 'scoped memory for tpu_custom_call.1']
    #allocation8 [shape = 'u8[32768]{0}', space=vmem, size = 0x8000, scoped, tag = 'output window, operand 0, single buffered']
    %8 = vsyncpa [#allocation4], 0
    %9 = vsyncpa [#allocation7], 0
    %10 = vsyncpa [#allocation5], 0
    // Predicated region
    $region2: #{tpu_custom_call.1} parent=1 // pred_check
      _
    $region3: #{tpu_custom_call.1} parent=1 // pred_check_branch
      %12 = sbr.rel (0) target = $region5
    $region4: #{tpu_custom_call.1} parent=1 // pred_region
      %14 = vsyncadd [#allocation4], 0
      %s15 = sshll.u32 %s0, 4
      %s16 = int_to_ptr.hbm [resolvable:$true] %s15
      %s17 = sshll.u32 [#allocation3], 4
      %s18 = int_to_ptr.vmem [resolvable:$true] %s17
      %23 = dma.hbm_to_vmem [thread:$0]  %s16, 512, %s18, [#allocation4], 64, 64, 4
    $region5: #{tpu_custom_call.1} parent=1 // pred_fallthru
      _
    // Predicated region
    $region6: #{tpu_custom_call.1} parent=1 // pred_check
      _
    $region7: #{tpu_custom_call.1} parent=1 // pred_check_branch
      %25 = sbr.rel (0) target = $region9
    $region8: #{tpu_custom_call.1} parent=1 // pred_region
      %27 = vsyncadd [#allocation7], 0
      %s28 = sshll.u32 %s1, 4
      %s29 = int_to_ptr.hbm [resolvable:$true] %s28
      %s30 = sshll.u32 [#allocation6], 4
      %s31 = int_to_ptr.vmem [resolvable:$true] %s30
      %36 = dma.hbm_to_vmem [thread:$0]  %s29, 1024, %s31, [#allocation7], 64, 64, 4
    $region9: #{tpu_custom_call.1} parent=1 // pred_fallthru
      _
    // Predicated region
    $region10: #{tpu_custom_call.1} parent=1 // pred_check
      _
    $region11: #{tpu_custom_call.1} parent=1 // pred_check_branch
      %38 = sbr.rel (0) target = $region13
    $region12: #{tpu_custom_call.1} parent=1 // pred_region
      _
    $region13: #{tpu_custom_call.1} parent=1 // pred_fallthru
      _
    // Predicated region
    $region14: #{tpu_custom_call.1} parent=1 // pred_check
      _
    $region15: #{tpu_custom_call.1} parent=1 // pred_check_branch
      %40 = sbr.rel (0) target = $region17
    $region16: #{tpu_custom_call.1} parent=1 // pred_region
      %42 = dma.done [#allocation4], 512
    $region17: #{tpu_custom_call.1} parent=1 // pred_fallthru
      _
    // Predicated region
    $region18: #{tpu_custom_call.1} parent=1 // pred_check
      _
    $region19: #{tpu_custom_call.1} parent=1 // pred_check_branch
      %44 = sbr.rel (0) target = $region21
    $region20: #{tpu_custom_call.1} parent=1 // pred_region
      %46 = dma.done [#allocation7], 1024
    $region21: #{tpu_custom_call.1} parent=1 // pred_fallthru
      _
    %p47 = scmp.eq.s32.totalorder 0, 0
    // Predicated region
    $region22: #{tpu_custom_call.1} parent=1 // pred_check
      %p48 = pneg %p47
    $region23: #{tpu_custom_call.1} parent=1 // pred_check_branch
      %50 = sbr.rel (%p48) target = $region25
    $region24: #{tpu_custom_call.1} parent=1 // pred_region
      %51 = vst [vmem:[#allocation2] sm:$0xff] 0.0
      %52 = vst [vmem:[#allocation2 + $0x8] sm:$0xff] 0.0
      %53 = vst [vmem:[#allocation2 + $0x10] sm:$0xff] 0.0
      %54 = vst [vmem:[#allocation2 + $0x18] sm:$0xff] 0.0
      %55 = vst [vmem:[#allocation2 + $0x20] sm:$0xff] 0.0
      %56 = vst [vmem:[#allocation2 + $0x28] sm:$0xff] 0.0
      %57 = vst [vmem:[#allocation2 + $0x30] sm:$0xff] 0.0
      %58 = vst [vmem:[#allocation2 + $0x38] sm:$0xff] 0.0
    $region25: #{tpu_custom_call.1} parent=1 // pred_fallthru
      _
    %v59 = vld [vmem:[#allocation2] sm:$0xff]
    %v60 = vld [vmem:[#allocation2 + $0x8] sm:$0xff]
    %v61 = vld [vmem:[#allocation2 + $0x10] sm:$0xff]
    %v62 = vld [vmem:[#allocation2 + $0x18] sm:$0xff]
    %v63 = vld [vmem:[#allocation2 + $0x20] sm:$0xff]
    %v64 = vld [vmem:[#allocation2 + $0x28] sm:$0xff]
    %v65 = vld [vmem:[#allocation2 + $0x30] sm:$0xff]
    %v66 = vld [vmem:[#allocation2 + $0x38] sm:$0xff]
    %v67 = vld [vmem:[#allocation3] sm:$0xf]
    %v68 = vld [vmem:[#allocation3 + $0x4] sm:$0xf]
    %v69 = vld [vmem:[#allocation3 + $0x8] sm:$0xf]
    %v70 = vld [vmem:[#allocation3 + $0xc] sm:$0xf]
    %v71 = vld [vmem:[#allocation3 + $0x10] sm:$0xf]
    %v72 = vld [vmem:[#allocation3 + $0x14] sm:$0xf]
    %v73 = vld [vmem:[#allocation3 + $0x18] sm:$0xf]
    %v74 = vld [vmem:[#allocation3 + $0x1c] sm:$0xf]
    %v75 = vld [vmem:[#allocation6] sm:$0xf]
    %v76 = vld [vmem:[#allocation6 + $0x4] sm:$0xf]
    %v77 = vld [vmem:[#allocation6 + $0x8] sm:$0xf]
    %v78 = vld [vmem:[#allocation6 + $0xc] sm:$0xf]
    %v79 = vld [vmem:[#allocation6 + $0x10] sm:$0xf]
    %v80 = vld [vmem:[#allocation6 + $0x14] sm:$0xf]
    %v81 = vld [vmem:[#allocation6 + $0x18] sm:$0xf]
    %v82 = vld [vmem:[#allocation6 + $0x1c] sm:$0xf]
    %v83 = vld [vmem:[#allocation6 + $0x20] sm:$0xf]
    %v84 = vld [vmem:[#allocation6 + $0x24] sm:$0xf]
    %v85 = vld [vmem:[#allocation6 + $0x28] sm:$0xf]
    %v86 = vld [vmem:[#allocation6 + $0x2c] sm:$0xf]
    %v87 = vld [vmem:[#allocation6 + $0x30] sm:$0xf]
    %v88 = vld [vmem:[#allocation6 + $0x34] sm:$0xf]
    %v89 = vld [vmem:[#allocation6 + $0x38] sm:$0xf]
    %v90 = vld [vmem:[#allocation6 + $0x3c] sm:$0xf]
    %v99 = vunpack.c.l.b16 %v67
    %v100 = vunpack.c.l.b16 %v68
    %v101 = vunpack.c.l.b16 %v69
    %v102 = vunpack.c.l.b16 %v70
    %v103 = vunpack.c.l.b16 %v71
    %v104 = vunpack.c.l.b16 %v72
    %v105 = vunpack.c.l.b16 %v73
    %v106 = vunpack.c.l.b16 %v74
    %v107 = vpack.c.b16 %v100, %v99
    %v108 = vpack.c.b16 %v102, %v101
    %v109 = vpack.c.b16 %v104, %v103
    %v110 = vpack.c.b16 %v106, %v105
    %v131 = vunpack.c.l.b16 %v75
    %v132 = vunpack.c.l.b16 %v76
    %v133 = vunpack.c.l.b16 %v77
    %v134 = vunpack.c.l.b16 %v78
    %v135 = vunpack.c.l.b16 %v79
    %v136 = vunpack.c.l.b16 %v80
    %v137 = vunpack.c.l.b16 %v81
    %v138 = vunpack.c.l.b16 %v82
    %v139 = vunpack.c.l.b16 %v83
    %v140 = vunpack.c.l.b16 %v84
    %v141 = vunpack.c.l.b16 %v85
    %v142 = vunpack.c.l.b16 %v86
    %v143 = vunpack.c.l.b16 %v87
    %v144 = vunpack.c.l.b16 %v88
    %v145 = vunpack.c.l.b16 %v89
    %v146 = vunpack.c.l.b16 %v90
    %v147 = vpack.c.b16 %v132, %v131
    %v148 = vpack.c.b16 %v134, %v133
    %v149 = vpack.c.b16 %v136, %v135
    %v150 = vpack.c.b16 %v138, %v137
    %v151 = vpack.c.b16 %v140, %v139
    %v152 = vpack.c.b16 %v142, %v141
    %v153 = vpack.c.b16 %v144, %v143
    %v154 = vpack.c.b16 %v146, %v145
    %163 = vmatpush.bf16.msra.mxu0 %v154
    %164 = vmatpush.bf16.msra.mxu0 %v153
    %165 = vmatpush.bf16.msra.mxu0 %v152
    %166 = vmatpush.bf16.msra.mxu0 %v151
    %167 = vmatpush.bf16.msra.mxu0 %v150
    %168 = vmatpush.bf16.msra.mxu0 %v149
    %169 = vmatpush.bf16.msra.mxu0 %v148
    %170 = vmatpush.bf16.msra.mxu0 %v147
    %171 = vmatmul.bf16.gmra.mxu0 %v107
    %v172 = vpop.f32.mrf.mxu0
    %v173 = vadd.f32 0.0, %v172
    %v174 = vpop.f32.mrf.mxu0
    %v175 = vadd.f32 0.0, %v174
    %176 = vmatmul.bf16.gmra.mxu0 %v108
    %v177 = vpop.f32.mrf.mxu0
    %v178 = vadd.f32 0.0, %v177
    %v179 = vpop.f32.mrf.mxu0
    %v180 = vadd.f32 0.0, %v179
    %181 = vmatmul.bf16.gmra.mxu0 %v109
    %v182 = vpop.f32.mrf.mxu0
    %v183 = vadd.f32 0.0, %v182
    %v184 = vpop.f32.mrf.mxu0
    %v185 = vadd.f32 0.0, %v184
    %186 = vmatmul.bf16.gmra.mxu0 %v110
    %v187 = vpop.f32.mrf.mxu0
    %v188 = vadd.f32 0.0, %v187
    %v189 = vpop.f32.mrf.mxu0
    %v190 = vadd.f32 0.0, %v189
    %191 = vdwg.mxu0
    %v192 = vadd.f32 %v59, %v173
    %v193 = vadd.f32 %v60, %v175
    %v194 = vadd.f32 %v61, %v178
    %v195 = vadd.f32 %v62, %v180
    %v196 = vadd.f32 %v63, %v183
    %v197 = vadd.f32 %v64, %v185
    %v198 = vadd.f32 %v65, %v188
    %v199 = vadd.f32 %v66, %v190
    %200 = vst [vmem:[#allocation2] sm:$0xff] %v192
    %201 = vst [vmem:[#allocation2 + $0x8] sm:$0xff] %v193
    %202 = vst [vmem:[#allocation2 + $0x10] sm:$0xff] %v194
    %203 = vst [vmem:[#allocation2 + $0x18] sm:$0xff] %v195
    %204 = vst [vmem:[#allocation2 + $0x20] sm:$0xff] %v196
    %205 = vst [vmem:[#allocation2 + $0x28] sm:$0xff] %v197
    %206 = vst [vmem:[#allocation2 + $0x30] sm:$0xff] %v198
    %207 = vst [vmem:[#allocation2 + $0x38] sm:$0xff] %v199
    // Predicated region
    $region26: #{tpu_custom_call.1} parent=1 // pred_check
      %p208 = pneg %p47
    $region27: #{tpu_custom_call.1} parent=1 // pred_check_branch
      %210 = sbr.rel (%p208) target = $region29
    $region28: #{tpu_custom_call.1} parent=1 // pred_region
      %v211 = vld [vmem:[#allocation2] sm:$0xff]
      %v212 = vld [vmem:[#allocation2 + $0x8] sm:$0xff]
      %v213 = vld [vmem:[#allocation2 + $0x10] sm:$0xff]
      %v214 = vld [vmem:[#allocation2 + $0x18] sm:$0xff]
      %v215 = vld [vmem:[#allocation2 + $0x20] sm:$0xff]
      %v216 = vld [vmem:[#allocation2 + $0x28] sm:$0xff]
      %v217 = vld [vmem:[#allocation2 + $0x30] sm:$0xff]
      %v218 = vld [vmem:[#allocation2 + $0x38] sm:$0xff]
      %v219 = vld [vmem:[%s2] sm:$0x1]
      %v221 = vperm.slane %v219, 0
      %v223 = vadd.f32 %v211, %v221
      %v224 = vadd.f32 %v212, %v221
      %v225 = vadd.f32 %v213, %v221
      %v226 = vadd.f32 %v214, %v221
      %v227 = vadd.f32 %v215, %v221
      %v228 = vadd.f32 %v216, %v221
      %v229 = vadd.f32 %v217, %v221
      %v230 = vadd.f32 %v218, %v221
      %v231 = vmin.f32 %v223, 0.0
      %v232 = vmin.f32 %v224, 0.0
      %v233 = vmin.f32 %v225, 0.0
      %v234 = vmin.f32 %v226, 0.0
      %v235 = vmin.f32 %v227, 0.0
      %v236 = vmin.f32 %v228, 0.0
      %v237 = vmin.f32 %v229, 0.0
      %v238 = vmin.f32 %v230, 0.0
      %v239 = vmul.f32 %v231, 1.442695
      %v240 = vpow.pop %v239
      %v241 = vmul.f32 %v232, 1.442695
      %v242 = vpow.pop %v241
      %v243 = vmul.f32 %v233, 1.442695
      %v244 = vpow.pop %v243
      %v245 = vmul.f32 %v234, 1.442695
      %v246 = vpow.pop %v245
      %v247 = vmul.f32 %v235, 1.442695
      %v248 = vpow.pop %v247
      %v249 = vmul.f32 %v236, 1.442695
      %v250 = vpow.pop %v249
      %v251 = vmul.f32 %v237, 1.442695
      %v252 = vpow.pop %v251
      %v253 = vmul.f32 %v238, 1.442695
      %v254 = vpow.pop %v253
      %v255 = vsub.f32 %v240, 1.0
      %v256 = vsub.f32 %v242, 1.0
      %v257 = vsub.f32 %v244, 1.0
      %v258 = vsub.f32 %v246, 1.0
      %v259 = vsub.f32 %v248, 1.0
      %v260 = vsub.f32 %v250, 1.0
      %v261 = vsub.f32 %v252, 1.0
      %v262 = vsub.f32 %v254, 1.0
      %v263 = vmul.f32 %v255, 1.6732632
      %v264 = vmul.f32 %v256, 1.6732632
      %v265 = vmul.f32 %v257, 1.6732632
      %v266 = vmul.f32 %v258, 1.6732632
      %v267 = vmul.f32 %v259, 1.6732632
      %v268 = vmul.f32 %v260, 1.6732632
      %v269 = vmul.f32 %v261, 1.6732632
      %v270 = vmul.f32 %v262, 1.6732632
      %vm271 = vcmp.gt.f32.partialorder %v223, 0.0
      %vm272 = vcmp.gt.f32.partialorder %v224, 0.0
      %vm273 = vcmp.gt.f32.partialorder %v225, 0.0
      %vm274 = vcmp.gt.f32.partialorder %v226, 0.0
      %vm275 = vcmp.gt.f32.partialorder %v227, 0.0
      %vm276 = vcmp.gt.f32.partialorder %v228, 0.0
      %vm277 = vcmp.gt.f32.partialorder %v229, 0.0
      %vm278 = vcmp.gt.f32.partialorder %v230, 0.0
      %v279 = vsel %vm271, %v223, %v263
      %v280 = vsel %vm272, %v224, %v264
      %v281 = vsel %vm273, %v225, %v265
      %v282 = vsel %vm274, %v226, %v266
      %v283 = vsel %vm275, %v227, %v267
      %v284 = vsel %vm276, %v228, %v268
      %v285 = vsel %vm277, %v229, %v269
      %v286 = vsel %vm278, %v230, %v270
      %v287 = vmul.f32 %v279, 1.050701
      %v288 = vmul.f32 %v280, 1.050701
      %v289 = vmul.f32 %v281, 1.050701
      %v290 = vmul.f32 %v282, 1.050701
      %v291 = vmul.f32 %v283, 1.050701
      %v292 = vmul.f32 %v284, 1.050701
      %v293 = vmul.f32 %v285, 1.050701
      %v294 = vmul.f32 %v286, 1.050701
      %295 = vst [vmem:[#allocation8] sm:$0xff] %v287
      %296 = vst [vmem:[#allocation8 + $0x8] sm:$0xff] %v288
      %297 = vst [vmem:[#allocation8 + $0x10] sm:$0xff] %v289
      %298 = vst [vmem:[#allocation8 + $0x18] sm:$0xff] %v290
      %299 = vst [vmem:[#allocation8 + $0x20] sm:$0xff] %v291
      %300 = vst [vmem:[#allocation8 + $0x28] sm:$0xff] %v292
      %301 = vst [vmem:[#allocation8 + $0x30] sm:$0xff] %v293
      %302 = vst [vmem:[#allocation8 + $0x38] sm:$0xff] %v294
    $region29: #{tpu_custom_call.1} parent=1 // pred_fallthru
      _
    // Predicated region
    $region30: #{tpu_custom_call.1} parent=1 // pred_check
      _
    $region31: #{tpu_custom_call.1} parent=1 // pred_check_branch
      %304 = sbr.rel (0) target = $region33
    $region32: #{tpu_custom_call.1} parent=1 // pred_region
      %306 = vsyncadd [#allocation5], 0
      %s307 = sshll.u32 [#allocation8], 4
      %s308 = int_to_ptr.vmem [resolvable:$true] %s307
      %s309 = sshll.u32 %s3, 4
      %s310 = int_to_ptr.hbm [resolvable:$true] %s309
      %315 = dma.vmem_to_hbm [thread:$0]  %s308, 1024, %s310, [#allocation5], 128, 128, 8
    $region33: #{tpu_custom_call.1} parent=1 // pred_fallthru
      _
    // Predicated region
    $region34: #{tpu_custom_call.1} parent=1 // pred_check
      _
    $region35: #{tpu_custom_call.1} parent=1 // pred_check_branch
      %317 = sbr.rel (0) target = $region37
    $region36: #{tpu_custom_call.1} parent=1 // pred_region
      %319 = dma.done [#allocation5], 1024
    $region37: #{tpu_custom_call.1} parent=1 // pred_fallthru
      _
    %320 = vsyncpa [#allocation4], 1
    %321 = vsyncpa [#allocation7], 1
    %322 = vsyncpa [#allocation5], 1

</llo_original>
